<compile_context>
chip_gen: v7x
topology: tpu7x:2x2x1
jax: 0.10.0
libtpu: 0.0.40
codegen_flags: <defaults>
</compile_context>

<pallas_src>
import functools
import math

import jax
import jax.numpy as jnp
from jax import lax
from jax.experimental import pallas as pl
from jax.experimental.pallas import tpu as pltpu


# ----------------------------------------------------------------------------
# Kernels
# ----------------------------------------------------------------------------
def _mlp_kernel(x_ref, w1_ref, b1_ref, w2_ref, b2_ref, w3_ref, b3_ref, o_ref):
    """Fused 3-layer MLP on one (low_dims, TM) batch tile (batch on lanes).

    Weights are in PyTorch (out, in) layout; biases are (out, 1) columns.
    y = tanh(W3 @ relu(W2 @ relu(W1 @ x + b1) + b2) + b3)
    """
    x = x_ref[...]                                                   # (low_dims, TM)

    h = jnp.dot(w1_ref[...], x, preferred_element_type=jnp.float32) + b1_ref[...]
    h = jnp.maximum(h, 0.0)                                          # (hidden, TM)

    h = jnp.dot(w2_ref[...], h, preferred_element_type=jnp.float32) + b2_ref[...]
    h = jnp.maximum(h, 0.0)                                          # (hidden, TM)

    y = jnp.dot(w3_ref[...], h, preferred_element_type=jnp.float32) + b3_ref[...]
    o_ref[...] = jnp.tanh(y).astype(o_ref.dtype)                     # (low_dims, TM)


def _rollout_kernel(x_ref, w1_ref, b1_ref, w2_ref, b2_ref, w3_ref, b3_ref,
                    o_ref, *, num_steps):
    """Apply the dynamics `num_steps` times inside one kernel launch.

    x_ref: (low_dims, batch) initial state.
    o_ref: (num_steps, low_dims, batch) trajectory (state after each step).
    Weights/biases are DMA'd into VMEM once for the whole rollout.
    """
    w1 = w1_ref[...]; b1 = b1_ref[...]
    w2 = w2_ref[...]; b2 = b2_ref[...]
    w3 = w3_ref[...]; b3 = b3_ref[...]

    def step(t, x):
        h = jnp.maximum(jnp.dot(w1, x, preferred_element_type=jnp.float32) + b1, 0.0)
        h = jnp.maximum(jnp.dot(w2, h, preferred_element_type=jnp.float32) + b2, 0.0)
        y = jnp.tanh(jnp.dot(w3, h, preferred_element_type=jnp.float32) + b3)
        o_ref[t] = y.astype(o_ref.dtype)
        return y

    lax.fori_loop(0, num_steps, step, x_ref[...].astype(jnp.float32))


# ----------------------------------------------------------------------------
# Wrappers
# ----------------------------------------------------------------------------
def _round_up(x, m):
    return ((x + m - 1) // m) * m


def latent_dynamics_forward(x, params, *, tile_m=1024):
    """x: (batch, low_dims) float32.  params: (w1, b1, w2, b2, w3, b3) in
    PyTorch layout (weights (out, in), biases (out, 1))."""
    w1, b1, w2, b2, w3, b3 = params
    hidden, low_dims = w1.shape
    assert w2.shape == (hidden, hidden) and w3.shape == (low_dims, hidden)
    batch = x.shape[0]
    assert x.shape[1] == low_dims

    # Batch goes on the lane (last) axis for lane-dense vregs and stores.
    x_t = x.T                                                        # (low_dims, batch)

    if batch <= tile_m:
        # Single tile == full array: no (8,128) divisibility requirement.
        tm = batch
        n_tiles = 1
        x_in = x_t
    else:
        assert tile_m % 128 == 0, "tile_m must be a multiple of 128 (lane axis)"
        n_tiles = pl.cdiv(batch, tile_m)
        if n_tiles > 1 and n_tiles % 2 == 1:
            # Even grid length -> balanced 2-TensorCore split on v7x.
            n_tiles += 1
        tm = _round_up(pl.cdiv(batch, n_tiles), 128)
        pad = n_tiles * tm - batch
        x_in = jnp.pad(x_t, ((0, 0), (0, pad))) if pad else x_t

    grid = (x_in.shape[1] // tm,)
    const = lambda i: (0, 0)   # weights/biases: one DMA, VMEM-resident across grid

    out_t = pl.pallas_call(
        _mlp_kernel,
        out_shape=jax.ShapeDtypeStruct((low_dims, x_in.shape[1]), x.dtype),
        grid=grid,
        in_specs=[
            pl.BlockSpec((low_dims, tm), lambda i: (0, i)),   # activations, tiled on lanes
            pl.BlockSpec(w1.shape, const),
            pl.BlockSpec(b1.shape, const),
            pl.BlockSpec(w2.shape, const),
            pl.BlockSpec(b2.shape, const),
            pl.BlockSpec(w3.shape, const),
            pl.BlockSpec(b3.shape, const),
        ],
        out_specs=pl.BlockSpec((low_dims, tm), lambda i: (0, i)),
        compiler_params=pltpu.CompilerParams(
            dimension_semantics=("parallel",),   # batch axis shards over v7x's 2 TCs
        ),
    )(x_in, w1, b1, w2, b2, w3, b3)

    return out_t[:, :batch].T                                        # (batch, low_dims)


def latent_dynamics_rollout(x0, params, num_steps):
    """Run the dynamics `num_steps` times starting from x0: (batch, low_dims).
    Returns the trajectory (num_steps, batch, low_dims). One kernel launch total,
    amortizing launch + weight-DMA cost across all steps (the real latency lever
    at batch~2)."""
    w1, b1, w2, b2, w3, b3 = params
    hidden, low_dims = w1.shape
    batch = x0.shape[0]
    assert x0.shape[1] == low_dims

    out = pl.pallas_call(
        functools.partial(_rollout_kernel, num_steps=num_steps),
        out_shape=jax.ShapeDtypeStruct((num_steps, low_dims, batch), x0.dtype),
    )(x0.T, w1, b1, w2, b2, w3, b3)

    return jnp.transpose(out, (0, 2, 1))                             # (T, batch, low_dims)


# ----------------------------------------------------------------------------
# Init + plain-JAX reference
# ----------------------------------------------------------------------------
def init_latent_dynamics_params(key, low_dims, hidden_shape, num_layers=2,
                                dtype=jnp.float32):
    """Synthetic init mirroring nn.Linear's uniform(-1/sqrt(fan_in), 1/sqrt(fan_in)).
    Weights in PyTorch (out, in) layout; biases shaped (out, 1)."""
    assert num_layers == 2, "kernel is specialized for the default num_layers=2"
    dims = [(hidden_shape, low_dims), (hidden_shape, hidden_shape),
            (low_dims, hidden_shape)]
    params = []
    for i, (fan_out, fan_in) in enumerate(dims):
        kw, kb = jax.random.split(jax.random.fold_in(key, i))
        bound = 1.0 / math.sqrt(fan_in)
        w = jax.random.uniform(kw, (fan_out, fan_in), dtype, -bound, bound)
        b = jax.random.uniform(kb, (fan_out, 1), dtype, -bound, bound)
        params += [w, b]
    return tuple(params)


def latent_dynamics_ref(x, params):
    """Plain-JAX reference (PyTorch semantics: y = x @ W.T + b)."""
    w1, b1, w2, b2, w3, b3 = params
    h = jnp.maximum(x @ w1.T + b1[:, 0], 0.0)
    h = jnp.maximum(h @ w2.T + b2[:, 0], 0.0)
    return jnp.tanh(h @ w3.T + b3[:, 0])


if __name__ == "__main__":
    key = jax.random.PRNGKey(0)

    low_dims = 4       # config['low_dims']
    hidden_shape = 32  # default hidden_shape
    num_layers = 2     # default num_layers

    kx, kp, kx2 = jax.random.split(key, 3)
    params = init_latent_dynamics_params(kp, low_dims, hidden_shape, num_layers)

    # --- small-shape run (matches the module's typical latent usage) ---
    batch = 2
    x = jax.random.normal(kx, (batch, low_dims), dtype=jnp.float32)
    out = jax.block_until_ready(latent_dynamics_forward(x, params))
    ref = latent_dynamics_ref(x, params)
    assert out.shape == (batch, low_dims)
    assert jnp.allclose(out, ref, atol=1e-5, rtol=1e-5), "small-batch mismatch vs JAX reference"

    # --- larger batch: exercises transpose + pad + even-grid tiled path ---
    big_batch = 1500   # not a multiple of tile_m -> pad + slice; odd tile count -> evened
    xb = jax.random.normal(kx2, (big_batch, low_dims), dtype=jnp.float32)
    outb = jax.block_until_ready(latent_dynamics_forward(xb, params, tile_m=512))
    refb = latent_dynamics_ref(xb, params)
    assert outb.shape == (big_batch, low_dims)
    assert jnp.allclose(outb, refb, atol=1e-5, rtol=1e-5), "big-batch mismatch vs JAX reference"

    # --- fused rollout: T dynamics steps in one launch (the real use case) ---
    num_steps = 8
    traj = jax.block_until_ready(latent_dynamics_rollout(x, params, num_steps))
    assert traj.shape == (num_steps, batch, low_dims)
    xr = x
    for t in range(num_steps):
        xr = latent_dynamics_ref(xr, params)
        assert jnp.allclose(traj[t], xr, atol=1e-4, rtol=1e-4), f"rollout mismatch at step {t}"

    print("KERNEL_OK")
</pallas_src>

<mosaic_0001>
module attributes {stable_mosaic.version = 11 : i64} {
  func.func @_mlp_kernel(%arg0: i32, %arg1: memref<4x2xf32, #tpu.memory_space<vmem>>, %arg2: memref<32x4xf32, #tpu.memory_space<vmem>>, %arg3: memref<32x1xf32, #tpu.memory_space<vmem>>, %arg4: memref<32x32xf32, #tpu.memory_space<vmem>>, %arg5: memref<32x1xf32, #tpu.memory_space<vmem>>, %arg6: memref<4x32xf32, #tpu.memory_space<vmem>>, %arg7: memref<4x1xf32, #tpu.memory_space<vmem>>, %arg8: memref<4x2xf32, #tpu.memory_space<vmem>>) attributes {dimension_semantics = [#tpu.dimension_semantics<parallel>], iteration_bounds = array<i64: 1>, scalar_prefetch = 0 : i64, scratch_operands = 0 : i64, tpu.core_type = #tpu.core_type<tc>, window_params = [{transform_indices = @transform_0, window_bounds = array<i64: 4, 2>}, {pipeline_mode = #tpu.pipeline_mode<synchronous>, transform_indices = @transform_1, window_bounds = array<i64: 32, 4>}, {pipeline_mode = #tpu.pipeline_mode<synchronous>, transform_indices = @transform_2, window_bounds = array<i64: 32, 1>}, {pipeline_mode = #tpu.pipeline_mode<synchronous>, transform_indices = @transform_3, window_bounds = array<i64: 32, 32>}, {pipeline_mode = #tpu.pipeline_mode<synchronous>, transform_indices = @transform_4, window_bounds = array<i64: 32, 1>}, {pipeline_mode = #tpu.pipeline_mode<synchronous>, transform_indices = @transform_5, window_bounds = array<i64: 4, 32>}, {pipeline_mode = #tpu.pipeline_mode<synchronous>, transform_indices = @transform_6, window_bounds = array<i64: 4, 1>}, {transform_indices = @transform_7, window_bounds = array<i64: 4, 2>}]} {
    %c0 = arith.constant 0 : index
    %c0_0 = arith.constant 0 : index
    %0 = vector.load %arg1[%c0, %c0_0] : memref<4x2xf32, #tpu.memory_space<vmem>>, vector<4x2xf32>
    %c0_1 = arith.constant 0 : index
    %c0_2 = arith.constant 0 : index
    %1 = vector.load %arg2[%c0_1, %c0_2] : memref<32x4xf32, #tpu.memory_space<vmem>>, vector<32x4xf32>
    %cst = arith.constant dense<0.000000e+00> : vector<32x2xf32>
    %2 = tpu.matmul %1, %0, %cst {dimension_numbers = #tpu.dot_dimension_numbers<[1], [0], [0], [1], [0, 0, 1, 1], [], []>} : vector<32x4xf32>, vector<4x2xf32>, vector<32x2xf32> -> vector<32x2xf32>
    %c0_3 = arith.constant 0 : index
    %c0_4 = arith.constant 0 : index
    %3 = vector.load %arg3[%c0_3, %c0_4] : memref<32x1xf32, #tpu.memory_space<vmem>>, vector<32x1xf32>
    %4 = vector.broadcast %3 : vector<32x1xf32> to vector<32x2xf32>
    %5 = arith.addf %2, %4 : vector<32x2xf32>
    %cst_5 = arith.constant 0.000000e+00 : f32
    %6 = vector.broadcast %cst_5 : f32 to vector<32x2xf32>
    %7 = arith.maximumf %5, %6 : vector<32x2xf32>
    %c0_6 = arith.constant 0 : index
    %c0_7 = arith.constant 0 : index
    %8 = vector.load %arg4[%c0_6, %c0_7] : memref<32x32xf32, #tpu.memory_space<vmem>>, vector<32x32xf32>
    %cst_8 = arith.constant dense<0.000000e+00> : vector<32x2xf32>
    %9 = tpu.matmul %8, %7, %cst_8 {dimension_numbers = #tpu.dot_dimension_numbers<[1], [0], [0], [1], [0, 0, 1, 1], [], []>} : vector<32x32xf32>, vector<32x2xf32>, vector<32x2xf32> -> vector<32x2xf32>
    %c0_9 = arith.constant 0 : index
    %c0_10 = arith.constant 0 : index
    %10 = vector.load %arg5[%c0_9, %c0_10] : memref<32x1xf32, #tpu.memory_space<vmem>>, vector<32x1xf32>
    %11 = vector.broadcast %10 : vector<32x1xf32> to vector<32x2xf32>
    %12 = arith.addf %9, %11 : vector<32x2xf32>
    %cst_11 = arith.constant 0.000000e+00 : f32
    %13 = vector.broadcast %cst_11 : f32 to vector<32x2xf32>
    %14 = arith.maximumf %12, %13 : vector<32x2xf32>
    %c0_12 = arith.constant 0 : index
    %c0_13 = arith.constant 0 : index
    %15 = vector.load %arg6[%c0_12, %c0_13] : memref<4x32xf32, #tpu.memory_space<vmem>>, vector<4x32xf32>
    %cst_14 = arith.constant dense<0.000000e+00> : vector<4x2xf32>
    %16 = tpu.matmul %15, %14, %cst_14 {dimension_numbers = #tpu.dot_dimension_numbers<[1], [0], [0], [1], [0, 0, 1, 1], [], []>} : vector<4x32xf32>, vector<32x2xf32>, vector<4x2xf32> -> vector<4x2xf32>
    %c0_15 = arith.constant 0 : index
    %c0_16 = arith.constant 0 : index
    %17 = vector.load %arg7[%c0_15, %c0_16] : memref<4x1xf32, #tpu.memory_space<vmem>>, vector<4x1xf32>
    %18 = vector.broadcast %17 : vector<4x1xf32> to vector<4x2xf32>
    %19 = arith.addf %16, %18 : vector<4x2xf32>
    %20 = math.tanh %19 : vector<4x2xf32>
    %c0_17 = arith.constant 0 : index
    %c0_18 = arith.constant 0 : index
    %21 = vector.load %arg8[%c0_17, %c0_18] : memref<4x2xf32, #tpu.memory_space<vmem>>, vector<4x2xf32>
    tpu.vector_store %arg8[%c0_17, %c0_18], %20 {strides = array<i32>} : memref<4x2xf32, #tpu.memory_space<vmem>>, vector<4x2xf32>,
    return
  }
  func.func @transform_0(%arg0: i32) -> (i32, i32) {
    %c0_i32 = arith.constant 0 : i32
    %c0_i32_0 = arith.constant 0 : i32
    return %c0_i32, %arg0 : i32, i32
  }
  func.func @transform_1(%arg0: i32) -> (i32, i32) {
    %c0_i32 = arith.constant 0 : i32
    %c0_i32_0 = arith.constant 0 : i32
    %c0_i32_1 = arith.constant 0 : i32
    return %c0_i32, %c0_i32_0 : i32, i32
  }
  func.func @transform_2(%arg0: i32) -> (i32, i32) {
    %c0_i32 = arith.constant 0 : i32
    %c0_i32_0 = arith.constant 0 : i32
    %c0_i32_1 = arith.constant 0 : i32
    return %c0_i32, %c0_i32_0 : i32, i32
  }
  func.func @transform_3(%arg0: i32) -> (i32, i32) {
    %c0_i32 = arith.constant 0 : i32
    %c0_i32_0 = arith.constant 0 : i32
    %c0_i32_1 = arith.constant 0 : i32
    return %c0_i32, %c0_i32_0 : i32, i32
  }
  func.func @transform_4(%arg0: i32) -> (i32, i32) {
    %c0_i32 = arith.constant 0 : i32
    %c0_i32_0 = arith.constant 0 : i32
    %c0_i32_1 = arith.constant 0 : i32
    return %c0_i32, %c0_i32_0 : i32, i32
  }
  func.func @transform_5(%arg0: i32) -> (i32, i32) {
    %c0_i32 = arith.constant 0 : i32
    %c0_i32_0 = arith.constant 0 : i32
    %c0_i32_1 = arith.constant 0 : i32
    return %c0_i32, %c0_i32_0 : i32, i32
  }
  func.func @transform_6(%arg0: i32) -> (i32, i32) {
    %c0_i32 = arith.constant 0 : i32
    %c0_i32_0 = arith.constant 0 : i32
    %c0_i32_1 = arith.constant 0 : i32
    return %c0_i32, %c0_i32_0 : i32, i32
  }
  func.func @transform_7(%arg0: i32) -> (i32, i32) {
    %c0_i32 = arith.constant 0 : i32
    %c0_i32_0 = arith.constant 0 : i32
    return %c0_i32, %arg0 : i32, i32
  }
}

</mosaic_0001>

<llo_original>
// kernel: tpu_custom_call.1
$region0: #{tpu_custom_call.1}
  #allocation0 [shape = 'u32[]', space=smem, size = 0x4, offset = 0x4, fixed_abs, tag = 'smem constant byte address 0x4 - core index']
  #allocation1 [shape = 'u32[144,128]{1,0:T(1,128)}', space=vmem, size = 0x12000, scoped, tag = 'internal scratch']
  %s0 = inlined_call_operand.vmem [shape: f32[4,2], index: 0, kind: input, shape index: {}]
  %s1 = inlined_call_operand.vmem [shape: f32[32,4], index: 1, kind: input, shape index: {}]
  %s2 = inlined_call_operand.vmem [shape: f32[32,1], index: 2, kind: input, shape index: {}]
  %s3 = inlined_call_operand.vmem [shape: f32[32,32], index: 3, kind: input, shape index: {}]
  %s4 = inlined_call_operand.vmem [shape: f32[32,1], index: 4, kind: input, shape index: {}]
  %s5 = inlined_call_operand.vmem [shape: f32[4,32], index: 5, kind: input, shape index: {}]
  %s6 = inlined_call_operand.vmem [shape: f32[4,1], index: 6, kind: input, shape index: {}]
  %s7 = inlined_call_operand.vmem [shape: f32[4,2], index: 7, kind: output, shape index: {}]
  %s8 = sld [smem:[#allocation0]]
  $region38: #{tpu_custom_call.1} parent=0
    _
  %s10 = ssub.s32 1, %s8
  %s11 = scalar_select 0, %s10, %s8
  // Predicated region
  $region2: #{tpu_custom_call.1} parent=0 // pred_check
    _
  $region3: #{tpu_custom_call.1} parent=0 // pred_check_branch
    %13 = sbr.rel (0) target = $region5
  $region4: #{tpu_custom_call.1} parent=0 // pred_region
    _
  $region5: #{tpu_custom_call.1} parent=0 // pred_fallthru
    _
  // Predicated region
  $region6: #{tpu_custom_call.1} parent=0 // pred_check
    _
  $region7: #{tpu_custom_call.1} parent=0 // pred_check_branch
    %15 = sbr.rel (0) target = $region9
  $region8: #{tpu_custom_call.1} parent=0 // pred_region
    _
  $region9: #{tpu_custom_call.1} parent=0 // pred_fallthru
    _
  // Predicated region
  $region10: #{tpu_custom_call.1} parent=0 // pred_check
    _
  $region11: #{tpu_custom_call.1} parent=0 // pred_check_branch
    %17 = sbr.rel (0) target = $region13
  $region12: #{tpu_custom_call.1} parent=0 // pred_region
    _
  $region13: #{tpu_custom_call.1} parent=0 // pred_fallthru
    _
  // Predicated region
  $region14: #{tpu_custom_call.1} parent=0 // pred_check
    _
  $region15: #{tpu_custom_call.1} parent=0 // pred_check_branch
    %19 = sbr.rel (0) target = $region17
  $region16: #{tpu_custom_call.1} parent=0 // pred_region
    _
  $region17: #{tpu_custom_call.1} parent=0 // pred_fallthru
    _
  // Predicated region
  $region18: #{tpu_custom_call.1} parent=0 // pred_check
    _
  $region19: #{tpu_custom_call.1} parent=0 // pred_check_branch
    %21 = sbr.rel (0) target = $region21
  $region20: #{tpu_custom_call.1} parent=0 // pred_region
    _
  $region21: #{tpu_custom_call.1} parent=0 // pred_fallthru
    _
  // Predicated region
  $region22: #{tpu_custom_call.1} parent=0 // pred_check
    _
  $region23: #{tpu_custom_call.1} parent=0 // pred_check_branch
    %23 = sbr.rel (0) target = $region25
  $region24: #{tpu_custom_call.1} parent=0 // pred_region
    _
  $region25: #{tpu_custom_call.1} parent=0 // pred_fallthru
    _
  // Predicated region
  $region26: #{tpu_custom_call.1} parent=0 // pred_check
    _
  $region27: #{tpu_custom_call.1} parent=0 // pred_check_branch
    %25 = sbr.rel (0) target = $region29
  $region28: #{tpu_custom_call.1} parent=0 // pred_region
    _
  $region29: #{tpu_custom_call.1} parent=0 // pred_fallthru
    _
  %v26 = vld [vmem:[%s0] sm:$0xf]
  %v27 = vld [vmem:[%s1] sm:$0xff]
  %v28 = vld [vmem:[%s1 + $0x8] sm:$0xff]
  %v29 = vld [vmem:[%s1 + $0x10] sm:$0xff]
  %v30 = vld [vmem:[%s1 + $0x18] sm:$0xff]
  %v31 = vld [vmem:[%s2] sm:$0xff]
  %v32 = vld [vmem:[%s2 + $0x8] sm:$0xff]
  %v33 = vld [vmem:[%s2 + $0x10] sm:$0xff]
  %v34 = vld [vmem:[%s2 + $0x18] sm:$0xff]
  %36 = vset.pattern.permute.xlu0 0
  %37 = vperm.xlu0 %36, %v31
  %v38 = vpop.permute.xlu0 %37
  %41 = vset.pattern.permute.xlu0 0
  %42 = vperm.xlu0 %41, %v32
  %v43 = vpop.permute.xlu0 %42
  %46 = vset.pattern.permute.xlu0 0
  %47 = vperm.xlu0 %46, %v33
  %v48 = vpop.permute.xlu0 %47
  %51 = vset.pattern.permute.xlu0 0
  %52 = vperm.xlu0 %51, %v34
  %v53 = vpop.permute.xlu0 %52
  %vm55 = vcmask 31744
  %v57 = vsel %vm55, %v27, 0
  %v60 = vsel %vm55, %v28, 0
  %v63 = vsel %vm55, %v29, 0
  %v66 = vsel %vm55, %v30, 0
  %vm68 = vcmask 1043456
  %v70 = vsel %vm68, %v26, 0
  %72 = vmatprep.subr.mxu0 0.0
  %73 = vmatpush1.msra.mxu0 %v70
  %74 = vmatprep.subr.mxu0 0.0
  %75 = vmatpush1.msra.mxu0 0.0
  %76 = vmatprep.subr.mxu0 0.0
  %77 = vmatpush1.msra.mxu0 0.0
  %78 = vmatprep.subr.mxu0 0.0
  %79 = vmatpush1.msra.mxu0 0.0
  %80 = vmatprep.subr.mxu0 0.0
  %81 = vmatpush1.msra.mxu0 0.0
  %82 = vmatprep.subr.mxu0 0.0
  %83 = vmatpush1.msra.mxu0 0.0
  %84 = vmatprep.subr.mxu0 0.0
  %85 = vmatpush1.msra.mxu0 0.0
  %86 = vmatprep.subr.mxu0 0.0
  %87 = vmatpush1.msra.mxu0 0.0
  %88 = vmatprep.subr.mxu0 0.0
  %89 = vmatpush1.msra.mxu0 0.0
  %90 = vmatprep.subr.mxu0 0.0
  %91 = vmatpush1.msra.mxu0 0.0
  %92 = vmatprep.subr.mxu0 0.0
  %93 = vmatpush1.msra.mxu0 0.0
  %94 = vmatprep.subr.mxu0 0.0
  %95 = vmatpush1.msra.mxu0 0.0
  %96 = vmatprep.subr.mxu0 0.0
  %97 = vmatpush1.msra.mxu0 0.0
  %98 = vmatprep.subr.mxu0 0.0
  %99 = vmatpush1.msra.mxu0 0.0
  %100 = vmatprep.subr.mxu0 0.0
  %101 = vmatpush1.msra.mxu0 0.0
  %102 = vmatprep.subr.mxu0 0.0
  %103 = vmatpush1.msra.mxu0 0.0
  %104 = vmatprep.subr.mxu0 0.0
  %105 = vmatpush1.msra.mxu0 0.0
  %106 = vmatprep.subr.mxu0 0.0
  %107 = vmatpush1.msra.mxu0 0.0
  %108 = vmatprep.subr.mxu0 0.0
  %109 = vmatpush1.msra.mxu0 0.0
  %110 = vmatprep.subr.mxu0 0.0
  %111 = vmatpush1.msra.mxu0 0.0
  %112 = vmatprep.subr.mxu0 0.0
  %113 = vmatpush1.msra.mxu0 0.0
  %114 = vmatprep.subr.mxu0 0.0
  %115 = vmatpush1.msra.mxu0 0.0
  %116 = vmatprep.subr.mxu0 0.0
  %117 = vmatpush1.msra.mxu0 0.0
  %118 = vmatprep.subr.mxu0 0.0
  %119 = vmatpush1.msra.mxu0 0.0
  %120 = vmatprep.subr.mxu0 0.0
  %121 = vmatpush1.msra.mxu0 0.0
  %122 = vmatprep.subr.mxu0 0.0
  %123 = vmatpush1.msra.mxu0 0.0
  %124 = vmatprep.subr.mxu0 0.0
  %125 = vmatpush1.msra.mxu0 0.0
  %126 = vmatprep.subr.mxu0 0.0
  %127 = vmatpush1.msra.mxu0 0.0
  %128 = vmatprep.subr.mxu0 0.0
  %129 = vmatpush1.msra.mxu0 0.0
  %130 = vmatprep.subr.mxu0 0.0
  %131 = vmatpush1.msra.mxu0 0.0
  %132 = vmatprep.subr.mxu0 0.0
  %133 = vmatpush1.msra.mxu0 0.0
  %134 = vmatprep.subr.mxu0 0.0
  %135 = vmatpush1.msra.mxu0 0.0
  %136 = vmatprep.mubr.f32.mxu0 0.0
  %137 = vmatmul.mubr.f32.gmra.mrb[0].mxu0 %v57
  %v138 = vpop.f32.mrb[0].mxu0
  %v139 = vadd.f32 %v38, %v138
  %v140 = vpop.f32.mrb[0].mxu0
  %141 = vmatprep.mubr.f32.mxu0 0.0
  %142 = vmatmul.mubr.f32.gmra.mrb[0].mxu0 %v60
  %v143 = vpop.f32.mrb[0].mxu0
  %v144 = vadd.f32 %v43, %v143
  %v145 = vpop.f32.mrb[0].mxu0
  %146 = vmatprep.mubr.f32.mxu0 0.0
  %147 = vmatmul.mubr.f32.gmra.mrb[0].mxu0 %v63
  %v148 = vpop.f32.mrb[0].mxu0
  %v149 = vadd.f32 %v48, %v148
  %v150 = vpop.f32.mrb[0].mxu0
  %151 = vmatprep.mubr.f32.mxu0 0.0
  %152 = vmatmul.mubr.f32.gmra.mrb[0].mxu0 %v66
  %v153 = vpop.f32.mrb[0].mxu0
  %v154 = vadd.f32 %v53, %v153
  %v155 = vpop.f32.mrb[0].mxu0
  %156 = vdwg.mxu0
  %v157 = vmax.f32 %v139, 0.0
  %v158 = vmax.f32 %v144, 0.0
  %v159 = vmax.f32 %v149, 0.0
  %v160 = vmax.f32 %v154, 0.0
  %v161 = vld [vmem:[%s3] sm:$0xff]
  %v162 = vld [vmem:[%s3 + $0x8] sm:$0xff]
  %v163 = vld [vmem:[%s3 + $0x10] sm:$0xff]
  %v164 = vld [vmem:[%s3 + $0x18] sm:$0xff]
  %v165 = vld [vmem:[%s4] sm:$0xff]
  %v166 = vld [vmem:[%s4 + $0x8] sm:$0xff]
  %v167 = vld [vmem:[%s4 + $0x10] sm:$0xff]
  %v168 = vld [vmem:[%s4 + $0x18] sm:$0xff]
  %170 = vset.pattern.permute.xlu0 0
  %171 = vperm.xlu0 %170, %v165
  %v172 = vpop.permute.xlu0 %171
  %175 = vset.pattern.permute.xlu0 0
  %176 = vperm.xlu0 %175, %v166
  %v177 = vpop.permute.xlu0 %176
  %180 = vset.pattern.permute.xlu0 0
  %181 = vperm.xlu0 %180, %v167
  %v182 = vpop.permute.xlu0 %181
  %185 = vset.pattern.permute.xlu0 0
  %186 = vperm.xlu0 %185, %v168
  %v187 = vpop.permute.xlu0 %186
  %vm189 = vcmask 261120
  %v191 = vsel %vm189, %v161, 0
  %v194 = vsel %vm189, %v162, 0
  %v197 = vsel %vm189, %v163, 0
  %v200 = vsel %vm189, %v164, 0
  %202 = vmatprep.subr.mxu0 0.0
  %203 = vmatpush1.msra.mxu0 %v157
  %204 = vmatprep.subr.mxu0 0.0
  %205 = vmatpush1.msra.mxu0 %v158
  %206 = vmatprep.subr.mxu0 0.0
  %207 = vmatpush1.msra.mxu0 %v159
  %208 = vmatprep.subr.mxu0 0.0
  %209 = vmatpush1.msra.mxu0 %v160
  %210 = vmatprep.subr.mxu0 0.0
  %211 = vmatpush1.msra.mxu0 0.0
  %212 = vmatprep.subr.mxu0 0.0
  %213 = vmatpush1.msra.mxu0 0.0
  %214 = vmatprep.subr.mxu0 0.0
  %215 = vmatpush1.msra.mxu0 0.0
  %216 = vmatprep.subr.mxu0 0.0
  %217 = vmatpush1.msra.mxu0 0.0
  %218 = vmatprep.subr.mxu0 0.0
  %219 = vmatpush1.msra.mxu0 0.0
  %220 = vmatprep.subr.mxu0 0.0
  %221 = vmatpush1.msra.mxu0 0.0
  %222 = vmatprep.subr.mxu0 0.0
  %223 = vmatpush1.msra.mxu0 0.0
  %224 = vmatprep.subr.mxu0 0.0
  %225 = vmatpush1.msra.mxu0 0.0
  %226 = vmatprep.subr.mxu0 0.0
  %227 = vmatpush1.msra.mxu0 0.0
  %228 = vmatprep.subr.mxu0 0.0
  %229 = vmatpush1.msra.mxu0 0.0
  %230 = vmatprep.subr.mxu0 0.0
  %231 = vmatpush1.msra.mxu0 0.0
  %232 = vmatprep.subr.mxu0 0.0
  %233 = vmatpush1.msra.mxu0 0.0
  %234 = vmatprep.subr.mxu0 0.0
  %235 = vmatpush1.msra.mxu0 0.0
  %236 = vmatprep.subr.mxu0 0.0
  %237 = vmatpush1.msra.mxu0 0.0
  %238 = vmatprep.subr.mxu0 0.0
  %239 = vmatpush1.msra.mxu0 0.0
  %240 = vmatprep.subr.mxu0 0.0
  %241 = vmatpush1.msra.mxu0 0.0
  %242 = vmatprep.subr.mxu0 0.0
  %243 = vmatpush1.msra.mxu0 0.0
  %244 = vmatprep.subr.mxu0 0.0
  %245 = vmatpush1.msra.mxu0 0.0
  %246 = vmatprep.subr.mxu0 0.0
  %247 = vmatpush1.msra.mxu0 0.0
  %248 = vmatprep.subr.mxu0 0.0
  %249 = vmatpush1.msra.mxu0 0.0
  %250 = vmatprep.subr.mxu0 0.0
  %251 = vmatpush1.msra.mxu0 0.0
  %252 = vmatprep.subr.mxu0 0.0
  %253 = vmatpush1.msra.mxu0 0.0
  %254 = vmatprep.subr.mxu0 0.0
  %255 = vmatpush1.msra.mxu0 0.0
  %256 = vmatprep.subr.mxu0 0.0
  %257 = vmatpush1.msra.mxu0 0.0
  %258 = vmatprep.subr.mxu0 0.0
  %259 = vmatpush1.msra.mxu0 0.0
  %260 = vmatprep.subr.mxu0 0.0
  %261 = vmatpush1.msra.mxu0 0.0
  %262 = vmatprep.subr.mxu0 0.0
  %263 = vmatpush1.msra.mxu0 0.0
  %264 = vmatprep.subr.mxu0 0.0
  %265 = vmatpush1.msra.mxu0 0.0
  %266 = vmatprep.mubr.f32.mxu0 0.0
  %267 = vmatmul.mubr.f32.gmra.mrb[0].mxu0 %v191
  %v268 = vpop.f32.mrb[0].mxu0
  %v269 = vadd.f32 %v172, %v268
  %v270 = vpop.f32.mrb[0].mxu0
  %271 = vmatprep.mubr.f32.mxu0 0.0
  %272 = vmatmul.mubr.f32.gmra.mrb[0].mxu0 %v194
  %v273 = vpop.f32.mrb[0].mxu0
  %v274 = vadd.f32 %v177, %v273
  %v275 = vpop.f32.mrb[0].mxu0
  %276 = vmatprep.mubr.f32.mxu0 0.0
  %277 = vmatmul.mubr.f32.gmra.mrb[0].mxu0 %v197
  %v278 = vpop.f32.mrb[0].mxu0
  %v279 = vadd.f32 %v182, %v278
  %v280 = vpop.f32.mrb[0].mxu0
  %281 = vmatprep.mubr.f32.mxu0 0.0
  %282 = vmatmul.mubr.f32.gmra.mrb[0].mxu0 %v200
  %v283 = vpop.f32.mrb[0].mxu0
  %v284 = vadd.f32 %v187, %v283
  %v285 = vpop.f32.mrb[0].mxu0
  %286 = vdwg.mxu0
  %v287 = vmax.f32 %v269, 0.0
  %v288 = vmax.f32 %v274, 0.0
  %v289 = vmax.f32 %v279, 0.0
  %v290 = vmax.f32 %v284, 0.0
  %v291 = vld [vmem:[%s5] sm:$0xf]
  %v292 = vld [vmem:[%s6] sm:$0xf]
  %294 = vset.pattern.permute.xlu0 0
  %295 = vperm.xlu0 %294, %v292
  %v296 = vpop.permute.xlu0 %295
  %v299 = vsel %vm189, %v291, 0
  %301 = vmatprep.subr.mxu0 0.0
  %302 = vmatpush1.msra.mxu0 %v287
  %303 = vmatprep.subr.mxu0 0.0
  %304 = vmatpush1.msra.mxu0 %v288
  %305 = vmatprep.subr.mxu0 0.0
  %306 = vmatpush1.msra.mxu0 %v289
  %307 = vmatprep.subr.mxu0 0.0
  %308 = vmatpush1.msra.mxu0 %v290
  %309 = vmatprep.subr.mxu0 0.0
  %310 = vmatpush1.msra.mxu0 0.0
  %311 = vmatprep.subr.mxu0 0.0
  %312 = vmatpush1.msra.mxu0 0.0
  %313 = vmatprep.subr.mxu0 0.0
  %314 = vmatpush1.msra.mxu0 0.0
  %315 = vmatprep.subr.mxu0 0.0
  %316 = vmatpush1.msra.mxu0 0.0
  %317 = vmatprep.subr.mxu0 0.0
  %318 = vmatpush1.msra.mxu0 0.0
  %319 = vmatprep.subr.mxu0 0.0
  %320 = vmatpush1.msra.mxu0 0.0
  %321 = vmatprep.subr.mxu0 0.0
  %322 = vmatpush1.msra.mxu0 0.0
  %323 = vmatprep.subr.mxu0 0.0
  %324 = vmatpush1.msra.mxu0 0.0
  %325 = vmatprep.subr.mxu0 0.0
  %326 = vmatpush1.msra.mxu0 0.0
  %327 = vmatprep.subr.mxu0 0.0
  %328 = vmatpush1.msra.mxu0 0.0
  %329 = vmatprep.subr.mxu0 0.0
  %330 = vmatpush1.msra.mxu0 0.0
  %331 = vmatprep.subr.mxu0 0.0
  %332 = vmatpush1.msra.mxu0 0.0
  %333 = vmatprep.subr.mxu0 0.0
  %334 = vmatpush1.msra.mxu0 0.0
  %335 = vmatprep.subr.mxu0 0.0
  %336 = vmatpush1.msra.mxu0 0.0
  %337 = vmatprep.subr.mxu0 0.0
  %338 = vmatpush1.msra.mxu0 0.0
  %339 = vmatprep.subr.mxu0 0.0
  %340 = vmatpush1.msra.mxu0 0.0
  %341 = vmatprep.subr.mxu0 0.0
  %342 = vmatpush1.msra.mxu0 0.0
  %343 = vmatprep.subr.mxu0 0.0
  %344 = vmatpush1.msra.mxu0 0.0
  %345 = vmatprep.subr.mxu0 0.0
  %346 = vmatpush1.msra.mxu0 0.0
  %347 = vmatprep.subr.mxu0 0.0
  %348 = vmatpush1.msra.mxu0 0.0
  %349 = vmatprep.subr.mxu0 0.0
  %350 = vmatpush1.msra.mxu0 0.0
  %351 = vmatprep.subr.mxu0 0.0
  %352 = vmatpush1.msra.mxu0 0.0
  %353 = vmatprep.subr.mxu0 0.0
  %354 = vmatpush1.msra.mxu0 0.0
  %355 = vmatprep.subr.mxu0 0.0
  %356 = vmatpush1.msra.mxu0 0.0
  %357 = vmatprep.subr.mxu0 0.0
  %358 = vmatpush1.msra.mxu0 0.0
  %359 = vmatprep.subr.mxu0 0.0
  %360 = vmatpush1.msra.mxu0 0.0
  %361 = vmatprep.subr.mxu0 0.0
  %362 = vmatpush1.msra.mxu0 0.0
  %363 = vmatprep.subr.mxu0 0.0
  %364 = vmatpush1.msra.mxu0 0.0
  %365 = vmatprep.mubr.f32.mxu0 0.0
  %366 = vmatmul.mubr.f32.gmra.mrb[0].mxu0 %v299
  %v367 = vpop.f32.mrb[0].mxu0
  %v368 = vadd.f32 %v296, %v367
  %v369 = vpop.f32.mrb[0].mxu0
  %370 = vdwg.mxu0
  %v371 = vtanh.pop %v368
  %vm372 = vcmask 11264
  %373 = vst.msk [vmem:[%s7] sm:$0xf] %vm372, %v371
  // Predicated region
  $region30: #{tpu_custom_call.1} parent=0 // pred_check
    _
  $region31: #{tpu_custom_call.1} parent=0 // pred_check_branch
    %375 = sbr.rel (0) target = $region33
  $region32: #{tpu_custom_call.1} parent=0 // pred_region
    _
  $region33: #{tpu_custom_call.1} parent=0 // pred_fallthru
    _
  // Predicated region
  $region34: #{tpu_custom_call.1} parent=0 // pred_check
    _
  $region35: #{tpu_custom_call.1} parent=0 // pred_check_branch
    %377 = sbr.rel (0) target = $region37
  $region36: #{tpu_custom_call.1} parent=0 // pred_region
    _
  $region37: #{tpu_custom_call.1} parent=0 // pred_fallthru
    _

</llo_original>
